<compile_context>
chip_gen: v6e
topology: v6e:2x2x1
jax: 0.10.0
libtpu: 0.0.40
codegen_flags: <defaults>
</compile_context>

<pallas_src>
import functools

import jax
import jax.numpy as jnp
from jax.experimental import pallas as pl
from jax.experimental.pallas import tpu as pltpu

LANES = 128


def _policy_net_kernel(x_ref, w1_ref, w2_ref, w3_ref, wch_ref, pack_ref, out_ref,
                       *, out_dim):
    x = x_ref[...]                      # [TM, K_pad] f32

    b1 = pack_ref[0:1, :]               # (1, 128)
    b2 = pack_ref[1:2, :]
    b3 = pack_ref[2:3, :]
    b_head = pack_ref[3:4, :]           # bc in lanes [0, out_dim), bv at lane out_dim
    wv_row = pack_ref[4:5, :]           # value-head weight, transposed to (1, hidden)

    h1 = jnp.dot(x, w1_ref[...], preferred_element_type=jnp.float32) + b1
    h2 = jnp.dot(jnp.maximum(h1, 0.0), w2_ref[...],
                 preferred_element_type=jnp.float32) + b2
    h3 = jnp.dot(jnp.maximum(h2, 0.0), w3_ref[...],
                 preferred_element_type=jnp.float32) + b3

    # classification head on relu(h3); wch is zero-padded to 128 output lanes, and
    # its bias row already carries bv at lane out_dim.
    heads = jnp.dot(jnp.maximum(h3, 0.0), wch_ref[...],
                    preferred_element_type=jnp.float32) + b_head

    # value head on h3 (NO relu, per reference): VPU multiply + lane reduce,
    # deposited into lane out_dim of the lane-dense output slab.
    value_nb = jnp.sum(h3 * wv_row, axis=-1, keepdims=True)        # [TM, 1]
    lane = jax.lax.broadcasted_iota(jnp.int32, heads.shape, 1)
    out = heads + jnp.where(lane == out_dim, value_nb, 0.0)

    out_ref[...] = out.astype(out_ref.dtype)


def _round_up(a, m):
    return ((a + m - 1) // m) * m


def policy_network_forward(x, params):
    """x: [batch, in_dim] f32. Returns (value [batch,1], logits [batch,out_dim])."""
    w1, b1, w2, b2, w3, b3, wc, bc, wv, bv = params
    batch, in_dim = x.shape
    hidden = w1.shape[1]
    out_dim = wc.shape[1]

    assert hidden == LANES, "kernel packing assumes hidden_dim == 128"
    assert out_dim + 1 <= LANES, "logits + value must fit in one 128-lane slab"

    # ---- wrapper-side padding / packing (layout plumbing, no extra compute) ----
    k_pad = _round_up(in_dim, LANES)

    # batch tile: multiple of 8, capped at 256; batch padded to a tile multiple.
    tm = min(256, _round_up(batch, 8))
    batch_pad = _round_up(batch, tm)
    n_tiles = batch_pad // tm

    x_p = jnp.pad(x, ((0, batch_pad - batch), (0, k_pad - in_dim)))
    w1_p = jnp.pad(w1, ((0, k_pad - in_dim), (0, 0)))
    wch = jnp.pad(wc, ((0, 0), (0, LANES - out_dim)))          # [hidden, 128]

    pack = jnp.zeros((8, LANES), jnp.float32)
    pack = pack.at[0, :hidden].set(b1.reshape(-1))
    pack = pack.at[1, :hidden].set(b2.reshape(-1))
    pack = pack.at[2, :hidden].set(b3.reshape(-1))
    pack = pack.at[3, :out_dim].set(bc.reshape(-1))
    pack = pack.at[3, out_dim].set(bv.reshape(-1)[0])          # value bias at lane out_dim
    pack = pack.at[4, :hidden].set(wv.reshape(-1))             # wv^T as a lane row

    kernel = functools.partial(_policy_net_kernel, out_dim=out_dim)

    out = pl.pallas_call(
        kernel,
        out_shape=jax.ShapeDtypeStruct((batch_pad, LANES), jnp.float32),
        grid=(n_tiles,),
        in_specs=[
            pl.BlockSpec((tm, k_pad), lambda i: (i, 0)),        # x tile per grid step
            pl.BlockSpec((k_pad, hidden), lambda i: (0, 0)),    # weights VMEM-resident
            pl.BlockSpec((hidden, hidden), lambda i: (0, 0)),
            pl.BlockSpec((hidden, hidden), lambda i: (0, 0)),
            pl.BlockSpec((hidden, LANES), lambda i: (0, 0)),
            pl.BlockSpec((8, LANES), lambda i: (0, 0)),         # packed small operands
        ],
        out_specs=pl.BlockSpec((tm, LANES), lambda i: (i, 0)),  # lane-dense slab
        compiler_params=pltpu.CompilerParams(
            dimension_semantics=("parallel",)),
    )(x_p, w1_p, w2, w3, wch, pack)

    logits = out[:batch, :out_dim]
    value = out[:batch, out_dim:out_dim + 1]
    return value, logits


def init_params(key, in_dim, out_dim, hidden_dim=128):
    """Deterministic init matching nn.Linear shapes; weights stored as [in, out]."""
    keys = jax.random.split(key, 10)

    def linear(kw, kb, fan_in, fan_out):
        bound = 1.0 / jnp.sqrt(fan_in)
        w = jax.random.uniform(kw, (fan_in, fan_out), jnp.float32, -bound, bound)
        b = jax.random.uniform(kb, (1, fan_out), jnp.float32, -bound, bound)
        return w, b

    w1, b1 = linear(keys[0], keys[1], in_dim, hidden_dim)
    w2, b2 = linear(keys[2], keys[3], hidden_dim, hidden_dim)
    w3, b3 = linear(keys[4], keys[5], hidden_dim, hidden_dim)
    wc, bc = linear(keys[6], keys[7], hidden_dim, out_dim)
    wv, bv = linear(keys[8], keys[9], hidden_dim, 1)
    return (w1, b1, w2, b2, w3, b3, wc, bc, wv, bv)


def reference_forward(x, params):
    w1, b1, w2, b2, w3, b3, wc, bc, wv, bv = params
    h1 = x @ w1 + b1
    h2 = jnp.maximum(h1, 0.0) @ w2 + b2
    h3 = jnp.maximum(h2, 0.0) @ w3 + b3
    logits = jnp.maximum(h3, 0.0) @ wc + bc
    value = h3 @ wv + bv
    return value, logits


if __name__ == "__main__":
    batch, in_dim, out_dim, hidden_dim = 8, 32, 8, 128

    key = jax.random.PRNGKey(0)
    k_x, k_p = jax.random.split(key)
    x = jax.random.normal(k_x, (batch, in_dim), dtype=jnp.float32)
    params = init_params(k_p, in_dim, out_dim, hidden_dim)

    value, logits = policy_network_forward(x, params)
    jax.block_until_ready((value, logits))

    value_ref, logits_ref = reference_forward(x, params)
    assert value.shape == (batch, 1)
    assert logits.shape == (batch, out_dim)
    assert jnp.allclose(value, value_ref, atol=1e-4, rtol=1e-4)
    assert jnp.allclose(logits, logits_ref, atol=1e-4, rtol=1e-4)

    print("KERNEL_OK")
</pallas_src>

<mosaic_0001>
module attributes {stable_mosaic.version = 11 : i64} {
  func.func @_policy_net_kernel(%arg0: i32, %arg1: memref<8x128xf32, #tpu.memory_space<vmem>>, %arg2: memref<128x128xf32, #tpu.memory_space<vmem>>, %arg3: memref<128x128xf32, #tpu.memory_space<vmem>>, %arg4: memref<128x128xf32, #tpu.memory_space<vmem>>, %arg5: memref<128x128xf32, #tpu.memory_space<vmem>>, %arg6: memref<8x128xf32, #tpu.memory_space<vmem>>, %arg7: memref<8x128xf32, #tpu.memory_space<vmem>>) attributes {dimension_semantics = [#tpu.dimension_semantics<parallel>], iteration_bounds = array<i64: 1>, scalar_prefetch = 0 : i64, scratch_operands = 0 : i64, tpu.core_type = #tpu.core_type<tc>, window_params = [{transform_indices = @transform_0, window_bounds = array<i64: 8, 128>}, {pipeline_mode = #tpu.pipeline_mode<synchronous>, transform_indices = @transform_1, window_bounds = array<i64: 128, 128>}, {pipeline_mode = #tpu.pipeline_mode<synchronous>, transform_indices = @transform_2, window_bounds = array<i64: 128, 128>}, {pipeline_mode = #tpu.pipeline_mode<synchronous>, transform_indices = @transform_3, window_bounds = array<i64: 128, 128>}, {pipeline_mode = #tpu.pipeline_mode<synchronous>, transform_indices = @transform_4, window_bounds = array<i64: 128, 128>}, {pipeline_mode = #tpu.pipeline_mode<synchronous>, transform_indices = @transform_5, window_bounds = array<i64: 8, 128>}, {transform_indices = @transform_6, window_bounds = array<i64: 8, 128>}]} {
    %c0 = arith.constant 0 : index
    %c0_0 = arith.constant 0 : index
    %0 = vector.load %arg1[%c0, %c0_0] : memref<8x128xf32, #tpu.memory_space<vmem>>, vector<8x128xf32>
    %c0_1 = arith.constant 0 : index
    %c0_2 = arith.constant 0 : index
    %1 = vector.load %arg6[%c0_1, %c0_2] : memref<8x128xf32, #tpu.memory_space<vmem>>, vector<1x128xf32>
    %c1 = arith.constant 1 : index
    %c0_3 = arith.constant 0 : index
    %2 = vector.load %arg6[%c1, %c0_3] : memref<8x128xf32, #tpu.memory_space<vmem>>, vector<1x128xf32>
    %c2 = arith.constant 2 : index
    %c0_4 = arith.constant 0 : index
    %3 = vector.load %arg6[%c2, %c0_4] : memref<8x128xf32, #tpu.memory_space<vmem>>, vector<1x128xf32>
    %c3 = arith.constant 3 : index
    %c0_5 = arith.constant 0 : index
    %4 = vector.load %arg6[%c3, %c0_5] : memref<8x128xf32, #tpu.memory_space<vmem>>, vector<1x128xf32>
    %c4 = arith.constant 4 : index
    %c0_6 = arith.constant 0 : index
    %5 = vector.load %arg6[%c4, %c0_6] : memref<8x128xf32, #tpu.memory_space<vmem>>, vector<1x128xf32>
    %c0_7 = arith.constant 0 : index
    %c0_8 = arith.constant 0 : index
    %6 = vector.load %arg2[%c0_7, %c0_8] : memref<128x128xf32, #tpu.memory_space<vmem>>, vector<128x128xf32>
    %cst = arith.constant dense<0.000000e+00> : vector<8x128xf32>
    %7 = tpu.matmul %0, %6, %cst {dimension_numbers = #tpu.dot_dimension_numbers<[1], [0], [0], [1], [0, 0, 1, 1], [], []>} : vector<8x128xf32>, vector<128x128xf32>, vector<8x128xf32> -> vector<8x128xf32>
    %8 = vector.broadcast %1 : vector<1x128xf32> to vector<8x128xf32>
    %9 = arith.addf %7, %8 : vector<8x128xf32>
    %cst_9 = arith.constant 0.000000e+00 : f32
    %10 = vector.broadcast %cst_9 : f32 to vector<8x128xf32>
    %11 = arith.maximumf %9, %10 : vector<8x128xf32>
    %c0_10 = arith.constant 0 : index
    %c0_11 = arith.constant 0 : index
    %12 = vector.load %arg3[%c0_10, %c0_11] : memref<128x128xf32, #tpu.memory_space<vmem>>, vector<128x128xf32>
    %cst_12 = arith.constant dense<0.000000e+00> : vector<8x128xf32>
    %13 = tpu.matmul %11, %12, %cst_12 {dimension_numbers = #tpu.dot_dimension_numbers<[1], [0], [0], [1], [0, 0, 1, 1], [], []>} : vector<8x128xf32>, vector<128x128xf32>, vector<8x128xf32> -> vector<8x128xf32>
    %14 = vector.broadcast %2 : vector<1x128xf32> to vector<8x128xf32>
    %15 = arith.addf %13, %14 : vector<8x128xf32>
    %cst_13 = arith.constant 0.000000e+00 : f32
    %16 = vector.broadcast %cst_13 : f32 to vector<8x128xf32>
    %17 = arith.maximumf %15, %16 : vector<8x128xf32>
    %c0_14 = arith.constant 0 : index
    %c0_15 = arith.constant 0 : index
    %18 = vector.load %arg4[%c0_14, %c0_15] : memref<128x128xf32, #tpu.memory_space<vmem>>, vector<128x128xf32>
    %cst_16 = arith.constant dense<0.000000e+00> : vector<8x128xf32>
    %19 = tpu.matmul %17, %18, %cst_16 {dimension_numbers = #tpu.dot_dimension_numbers<[1], [0], [0], [1], [0, 0, 1, 1], [], []>} : vector<8x128xf32>, vector<128x128xf32>, vector<8x128xf32> -> vector<8x128xf32>
    %20 = vector.broadcast %3 : vector<1x128xf32> to vector<8x128xf32>
    %21 = arith.addf %19, %20 : vector<8x128xf32>
    %cst_17 = arith.constant 0.000000e+00 : f32
    %22 = vector.broadcast %cst_17 : f32 to vector<8x128xf32>
    %23 = arith.maximumf %21, %22 : vector<8x128xf32>
    %c0_18 = arith.constant 0 : index
    %c0_19 = arith.constant 0 : index
    %24 = vector.load %arg5[%c0_18, %c0_19] : memref<128x128xf32, #tpu.memory_space<vmem>>, vector<128x128xf32>
    %cst_20 = arith.constant dense<0.000000e+00> : vector<8x128xf32>
    %25 = tpu.matmul %23, %24, %cst_20 {dimension_numbers = #tpu.dot_dimension_numbers<[1], [0], [0], [1], [0, 0, 1, 1], [], []>} : vector<8x128xf32>, vector<128x128xf32>, vector<8x128xf32> -> vector<8x128xf32>
    %26 = vector.broadcast %4 : vector<1x128xf32> to vector<8x128xf32>
    %27 = arith.addf %25, %26 : vector<8x128xf32>
    %28 = vector.broadcast %5 : vector<1x128xf32> to vector<8x128xf32>
    %29 = arith.mulf %21, %28 : vector<8x128xf32>
    %cst_21 = arith.constant dense<0.000000e+00> : vector<8xf32>
    %30 = vector.multi_reduction <add>, %29, %cst_21 [1] : vector<8x128xf32> to vector<8xf32>
    %31 = vector.shape_cast %30 : vector<8xf32> to vector<8x1xf32>
    %32 = tpu.iota {dimensions = array<i32: 1>} : vector<8x128xi32>
    %c8_i32 = arith.constant 8 : i32
    %33 = vector.broadcast %c8_i32 : i32 to vector<8x128xi32>
    %34 = arith.cmpi eq, %32, %33 : vector<8x128xi32>
    %cst_22 = arith.constant 0.000000e+00 : f32
    %35 = vector.shape_cast %31 : vector<8x1xf32> to vector<8x1xf32>
    %36 = vector.broadcast %35 : vector<8x1xf32> to vector<8x128xf32>
    %37 = vector.broadcast %cst_22 : f32 to vector<8x128xf32>
    %38 = arith.select %34, %36, %37 : vector<8x128xi1>, vector<8x128xf32>
    %39 = arith.addf %27, %38 : vector<8x128xf32>
    %c0_23 = arith.constant 0 : index
    %c0_24 = arith.constant 0 : index
    %40 = vector.load %arg7[%c0_23, %c0_24] : memref<8x128xf32, #tpu.memory_space<vmem>>, vector<8x128xf32>
    tpu.vector_store %arg7[%c0_23, %c0_24], %39 {strides = array<i32>} : memref<8x128xf32, #tpu.memory_space<vmem>>, vector<8x128xf32>,
    return
  }
  func.func @transform_0(%arg0: i32) -> (i32, i32) {
    %c0_i32 = arith.constant 0 : i32
    %c0_i32_0 = arith.constant 0 : i32
    return %arg0, %c0_i32 : i32, i32
  }
  func.func @transform_1(%arg0: i32) -> (i32, i32) {
    %c0_i32 = arith.constant 0 : i32
    %c0_i32_0 = arith.constant 0 : i32
    %c0_i32_1 = arith.constant 0 : i32
    return %c0_i32, %c0_i32_0 : i32, i32
  }
  func.func @transform_2(%arg0: i32) -> (i32, i32) {
    %c0_i32 = arith.constant 0 : i32
    %c0_i32_0 = arith.constant 0 : i32
    %c0_i32_1 = arith.constant 0 : i32
    return %c0_i32, %c0_i32_0 : i32, i32
  }
  func.func @transform_3(%arg0: i32) -> (i32, i32) {
    %c0_i32 = arith.constant 0 : i32
    %c0_i32_0 = arith.constant 0 : i32
    %c0_i32_1 = arith.constant 0 : i32
    return %c0_i32, %c0_i32_0 : i32, i32
  }
  func.func @transform_4(%arg0: i32) -> (i32, i32) {
    %c0_i32 = arith.constant 0 : i32
    %c0_i32_0 = arith.constant 0 : i32
    %c0_i32_1 = arith.constant 0 : i32
    return %c0_i32, %c0_i32_0 : i32, i32
  }
  func.func @transform_5(%arg0: i32) -> (i32, i32) {
    %c0_i32 = arith.constant 0 : i32
    %c0_i32_0 = arith.constant 0 : i32
    %c0_i32_1 = arith.constant 0 : i32
    return %c0_i32, %c0_i32_0 : i32, i32
  }
  func.func @transform_6(%arg0: i32) -> (i32, i32) {
    %c0_i32 = arith.constant 0 : i32
    %c0_i32_0 = arith.constant 0 : i32
    return %arg0, %c0_i32 : i32, i32
  }
}

</mosaic_0001>

<llo_original>
// kernel: tpu_custom_call.1
$region0: #{tpu_custom_call.1}
  #allocation0 [shape = 'u32[]', space=smem, size = 0x4, offset = 0x4, fixed_abs, tag = 'smem constant byte address 0x4 - core index']
  #allocation1 [shape = 'u32[144,128]{1,0:T(1,128)}', space=vmem, size = 0x12000, scoped, tag = 'internal scratch']
  %s0 = inlined_call_operand.hbm [shape: f32[8,128], index: 0, kind: input, shape index: {}]
  %s1 = inlined_call_operand.hbm [shape: f32[128,128], index: 1, kind: input, shape index: {}]
  %s2 = inlined_call_operand.hbm [shape: f32[128,128], index: 2, kind: input, shape index: {}]
  %s3 = inlined_call_operand.hbm [shape: f32[128,128], index: 3, kind: input, shape index: {}]
  %s4 = inlined_call_operand.hbm [shape: f32[128,128], index: 4, kind: input, shape index: {}]
  %s5 = inlined_call_operand.vmem [shape: f32[8,128], index: 5, kind: input, shape index: {}]
  %s6 = inlined_call_operand.hbm [shape: f32[8,128], index: 6, kind: output, shape index: {}]
  %s7 = sld [smem:[#allocation0]]
  $region54: #{tpu_custom_call.1} parent=0
    _
  %s9 = ssub.s32 1, %s7
  %s10 = scalar_select 0, %s9, %s7
  $region1: #{tpu_custom_call.1} parent=0
    #allocation2 [shape = 'u8[4096]{0}', space=vmem, size = 0x1000, scoped, tag = 'input window, operand 0, single buffered']
    #allocation3 [shape = 's32[1]{0}', space=sflag, size = 0x4, scoped, tag = 'scoped memory for tpu_custom_call.1']
    #allocation4 [shape = 's32[1]{0}', space=sflag, size = 0x4, scoped, tag = 'scoped memory for tpu_custom_call.1']
    #allocation5 [shape = 'u8[65536]{0}', space=vmem, size = 0x10000, scoped, tag = 'input window, operand 1, single buffered']
    #allocation6 [shape = 's32[1]{0}', space=sflag, size = 0x4, scoped, tag = 'scoped memory for tpu_custom_call.1']
    #allocation7 [shape = 'u8[65536]{0}', space=vmem, size = 0x10000, scoped, tag = 'input window, operand 2, single buffered']
    #allocation8 [shape = 'u8[65536]{0}', space=vmem, size = 0x10000, scoped, tag = 'input window, operand 3, single buffered']
    #allocation9 [shape = 's32[1]{0}', space=sflag, size = 0x4, scoped, tag = 'scoped memory for tpu_custom_call.1']
    #allocation10 [shape = 'u8[65536]{0}', space=vmem, size = 0x10000, scoped, tag = 'input window, operand 4, single buffered']
    #allocation11 [shape = 'u8[4096]{0}', space=vmem, size = 0x1000, scoped, tag = 'output window, operand 0, single buffered']
    %11 = vsyncpa [#allocation3], 0
    %12 = vsyncpa [#allocation6], 0
    %13 = vsyncpa [#allocation9], 0
    %14 = vsyncpa [#allocation4], 0
    // Predicated region
    $region2: #{tpu_custom_call.1} parent=1 // pred_check
      _
    $region3: #{tpu_custom_call.1} parent=1 // pred_check_branch
      %16 = sbr.rel (0) target = $region5
    $region4: #{tpu_custom_call.1} parent=1 // pred_region
      %s18 = ssub.s32 128, 128
      %19 = vsyncadd [#allocation3], %s18
      %s21 = sshll.u32 [#allocation2], 4
      %s22 = int_to_ptr.vmem [resolvable:$true] %s21
      %24 = dma.hbm_to_vmem [thread:$0]  %s0, 128, %s22, [#allocation3]
    $region5: #{tpu_custom_call.1} parent=1 // pred_fallthru
      _
    // Predicated region
    $region6: #{tpu_custom_call.1} parent=1 // pred_check
      _
    $region7: #{tpu_custom_call.1} parent=1 // pred_check_branch
      %26 = sbr.rel (0) target = $region9
    $region8: #{tpu_custom_call.1} parent=1 // pred_region
      %s28 = ssub.s32 2048, 2048
      %29 = vsyncadd [#allocation6], %s28
      %s30 = sshll.u32 [#allocation5], 4
      %s31 = int_to_ptr.vmem [resolvable:$true] %s30
      %36 = dma.hbm_to_vmem [thread:$0]  %s1, 2048, %s31, [#allocation6], 128, 128, 8
    $region9: #{tpu_custom_call.1} parent=1 // pred_fallthru
      _
    // Predicated region
    $region10: #{tpu_custom_call.1} parent=1 // pred_check
      _
    $region11: #{tpu_custom_call.1} parent=1 // pred_check_branch
      %38 = sbr.rel (0) target = $region13
    $region12: #{tpu_custom_call.1} parent=1 // pred_region
      %s40 = ssub.s32 2048, 2048
      %41 = vsyncadd [#allocation6], %s40
      %s42 = sshll.u32 [#allocation7], 4
      %s43 = int_to_ptr.vmem [resolvable:$true] %s42
      %48 = dma.hbm_to_vmem [thread:$0]  %s2, 2048, %s43, [#allocation6], 128, 128, 8
    $region13: #{tpu_custom_call.1} parent=1 // pred_fallthru
      _
    // Predicated region
    $region14: #{tpu_custom_call.1} parent=1 // pred_check
      _
    $region15: #{tpu_custom_call.1} parent=1 // pred_check_branch
      %50 = sbr.rel (0) target = $region17
    $region16: #{tpu_custom_call.1} parent=1 // pred_region
      %s52 = ssub.s32 2048, 2048
      %53 = vsyncadd [#allocation9], %s52
      %s54 = sshll.u32 [#allocation8], 4
      %s55 = int_to_ptr.vmem [resolvable:$true] %s54
      %60 = dma.hbm_to_vmem [thread:$0]  %s3, 2048, %s55, [#allocation9], 128, 128, 8
    $region17: #{tpu_custom_call.1} parent=1 // pred_fallthru
      _
    // Predicated region
    $region18: #{tpu_custom_call.1} parent=1 // pred_check
      _
    $region19: #{tpu_custom_call.1} parent=1 // pred_check_branch
      %62 = sbr.rel (0) target = $region21
    $region20: #{tpu_custom_call.1} parent=1 // pred_region
      %s64 = ssub.s32 2048, 2048
      %65 = vsyncadd [#allocation9], %s64
      %s66 = sshll.u32 [#allocation10], 4
      %s67 = int_to_ptr.vmem [resolvable:$true] %s66
      %72 = dma.hbm_to_vmem [thread:$0]  %s4, 2048, %s67, [#allocation9], 128, 128, 8
    $region21: #{tpu_custom_call.1} parent=1 // pred_fallthru
      _
    // Predicated region
    $region22: #{tpu_custom_call.1} parent=1 // pred_check
      _
    $region23: #{tpu_custom_call.1} parent=1 // pred_check_branch
      %74 = sbr.rel (0) target = $region25
    $region24: #{tpu_custom_call.1} parent=1 // pred_region
      _
    $region25: #{tpu_custom_call.1} parent=1 // pred_fallthru
      _
    // Predicated region
    $region26: #{tpu_custom_call.1} parent=1 // pred_check
      _
    $region27: #{tpu_custom_call.1} parent=1 // pred_check_branch
      %76 = sbr.rel (0) target = $region29
    $region28: #{tpu_custom_call.1} parent=1 // pred_region
      %77 = dma.done [#allocation3], 128
    $region29: #{tpu_custom_call.1} parent=1 // pred_fallthru
      _
    // Predicated region
    $region30: #{tpu_custom_call.1} parent=1 // pred_check
      _
    $region31: #{tpu_custom_call.1} parent=1 // pred_check_branch
      %79 = sbr.rel (0) target = $region33
    $region32: #{tpu_custom_call.1} parent=1 // pred_region
      %80 = dma.done [#allocation6], 2048
    $region33: #{tpu_custom_call.1} parent=1 // pred_fallthru
      _
    // Predicated region
    $region34: #{tpu_custom_call.1} parent=1 // pred_check
      _
    $region35: #{tpu_custom_call.1} parent=1 // pred_check_branch
      %82 = sbr.rel (0) target = $region37
    $region36: #{tpu_custom_call.1} parent=1 // pred_region
      %83 = dma.done [#allocation6], 2048
    $region37: #{tpu_custom_call.1} parent=1 // pred_fallthru
      _
    // Predicated region
    $region38: #{tpu_custom_call.1} parent=1 // pred_check
      _
    $region39: #{tpu_custom_call.1} parent=1 // pred_check_branch
      %85 = sbr.rel (0) target = $region41
    $region40: #{tpu_custom_call.1} parent=1 // pred_region
      %86 = dma.done [#allocation9], 2048
    $region41: #{tpu_custom_call.1} parent=1 // pred_fallthru
      _
    // Predicated region
    $region42: #{tpu_custom_call.1} parent=1 // pred_check
      _
    $region43: #{tpu_custom_call.1} parent=1 // pred_check_branch
      %88 = sbr.rel (0) target = $region45
    $region44: #{tpu_custom_call.1} parent=1 // pred_region
      %89 = dma.done [#allocation9], 2048
    $region45: #{tpu_custom_call.1} parent=1 // pred_fallthru
      _
    %v90 = vld [vmem:[#allocation2] sm:$0xff]
    %v91 = vld [vmem:[%s5] sm:$0x1]
    %v92 = vld [vmem:[%s5 + $0x1] sm:$0x1]
    %v93 = vld [vmem:[%s5 + $0x2] sm:$0x1]
    %v94 = vld [vmem:[%s5 + $0x3] sm:$0x1]
    %v95 = vld [vmem:[%s5 + $0x4] sm:$0x1]
    %v96 = vld [vmem:[#allocation5] sm:$0xff]
    %v97 = vld [vmem:[#allocation5 + $0x8] sm:$0xff]
    %v98 = vld [vmem:[#allocation5 + $0x10] sm:$0xff]
    %v99 = vld [vmem:[#allocation5 + $0x18] sm:$0xff]
    %v100 = vld [vmem:[#allocation5 + $0x20] sm:$0xff]
    %v101 = vld [vmem:[#allocation5 + $0x28] sm:$0xff]
    %v102 = vld [vmem:[#allocation5 + $0x30] sm:$0xff]
    %v103 = vld [vmem:[#allocation5 + $0x38] sm:$0xff]
    %v104 = vld [vmem:[#allocation5 + $0x40] sm:$0xff]
    %v105 = vld [vmem:[#allocation5 + $0x48] sm:$0xff]
    %v106 = vld [vmem:[#allocation5 + $0x50] sm:$0xff]
    %v107 = vld [vmem:[#allocation5 + $0x58] sm:$0xff]
    %v108 = vld [vmem:[#allocation5 + $0x60] sm:$0xff]
    %v109 = vld [vmem:[#allocation5 + $0x68] sm:$0xff]
    %v110 = vld [vmem:[#allocation5 + $0x70] sm:$0xff]
    %v111 = vld [vmem:[#allocation5 + $0x78] sm:$0xff]
    %v112 = vlaneseq
    %v113 = vshrl.u32 %v112, 7
    %v114 = vsub.s32 0, %v113
    %v115 = vrot.slane %v91, %v114
    %116 = vmatprep.subr.mxu0 0.0
    %117 = vmatpush1.msra.mxu0 %v111
    %118 = vmatprep.subr.mxu0 0.0
    %119 = vmatpush1.msra.mxu0 %v110
    %120 = vmatprep.subr.mxu0 0.0
    %121 = vmatpush1.msra.mxu0 %v109
    %122 = vmatprep.subr.mxu0 0.0
    %123 = vmatpush1.msra.mxu0 %v108
    %124 = vmatprep.subr.mxu0 0.0
    %125 = vmatpush1.msra.mxu0 %v107
    %126 = vmatprep.subr.mxu0 0.0
    %127 = vmatpush1.msra.mxu0 %v106
    %128 = vmatprep.subr.mxu0 0.0
    %129 = vmatpush1.msra.mxu0 %v105
    %130 = vmatprep.subr.mxu0 0.0
    %131 = vmatpush1.msra.mxu0 %v104
    %132 = vmatprep.subr.mxu0 0.0
    %133 = vmatpush1.msra.mxu0 %v103
    %134 = vmatprep.subr.mxu0 0.0
    %135 = vmatpush1.msra.mxu0 %v102
    %136 = vmatprep.subr.mxu0 0.0
    %137 = vmatpush1.msra.mxu0 %v101
    %138 = vmatprep.subr.mxu0 0.0
    %139 = vmatpush1.msra.mxu0 %v100
    %140 = vmatprep.subr.mxu0 0.0
    %141 = vmatpush1.msra.mxu0 %v99
    %142 = vmatprep.subr.mxu0 0.0
    %143 = vmatpush1.msra.mxu0 %v98
    %144 = vmatprep.subr.mxu0 0.0
    %145 = vmatpush1.msra.mxu0 %v97
    %146 = vmatprep.subr.mxu0 0.0
    %147 = vmatpush1.msra.mxu0 %v96
    %148 = vmatprep.subr.mxu0 0.0
    %149 = vmatpush2.msra.mxu0 0.0
    %150 = vmatprep.subr.mxu0 0.0
    %151 = vmatpush2.msra.mxu0 0.0
    %152 = vmatprep.subr.mxu0 0.0
    %153 = vmatpush2.msra.mxu0 0.0
    %154 = vmatprep.subr.mxu0 0.0
    %155 = vmatpush2.msra.mxu0 0.0
    %156 = vmatprep.subr.mxu0 0.0
    %157 = vmatpush2.msra.mxu0 0.0
    %158 = vmatprep.subr.mxu0 0.0
    %159 = vmatpush2.msra.mxu0 0.0
    %160 = vmatprep.subr.mxu0 0.0
    %161 = vmatpush2.msra.mxu0 0.0
    %162 = vmatprep.subr.mxu0 0.0
    %163 = vmatpush2.msra.mxu0 0.0
    %164 = vmatprep.subr.mxu0 0.0
    %165 = vmatpush2.msra.mxu0 0.0
    %166 = vmatprep.subr.mxu0 0.0
    %167 = vmatpush2.msra.mxu0 0.0
    %168 = vmatprep.subr.mxu0 0.0
    %169 = vmatpush2.msra.mxu0 0.0
    %170 = vmatprep.subr.mxu0 0.0
    %171 = vmatpush2.msra.mxu0 0.0
    %172 = vmatprep.subr.mxu0 0.0
    %173 = vmatpush2.msra.mxu0 0.0
    %174 = vmatprep.subr.mxu0 0.0
    %175 = vmatpush2.msra.mxu0 0.0
    %176 = vmatprep.subr.mxu0 0.0
    %177 = vmatpush2.msra.mxu0 0.0
    %178 = vmatprep.subr.mxu0 0.0
    %179 = vmatpush2.msra.mxu0 0.0
    %180 = vmatprep.mubr.f32.mxu0 0.0
    %181 = vmatmul.mubr.f32.gmra.mxu0 %v90
    %v182 = vpop.f32.mrf.mxu0
    %v183 = vadd.f32 %v115, %v182
    %v184 = vpop.f32.mrf.mxu0
    %185 = vdwg.mxu0
    %v186 = vmax.f32 %v183, 0.0
    %v187 = vld [vmem:[#allocation7] sm:$0xff]
    %v188 = vld [vmem:[#allocation7 + $0x8] sm:$0xff]
    %v189 = vld [vmem:[#allocation7 + $0x10] sm:$0xff]
    %v190 = vld [vmem:[#allocation7 + $0x18] sm:$0xff]
    %v191 = vld [vmem:[#allocation7 + $0x20] sm:$0xff]
    %v192 = vld [vmem:[#allocation7 + $0x28] sm:$0xff]
    %v193 = vld [vmem:[#allocation7 + $0x30] sm:$0xff]
    %v194 = vld [vmem:[#allocation7 + $0x38] sm:$0xff]
    %v195 = vld [vmem:[#allocation7 + $0x40] sm:$0xff]
    %v196 = vld [vmem:[#allocation7 + $0x48] sm:$0xff]
    %v197 = vld [vmem:[#allocation7 + $0x50] sm:$0xff]
    %v198 = vld [vmem:[#allocation7 + $0x58] sm:$0xff]
    %v199 = vld [vmem:[#allocation7 + $0x60] sm:$0xff]
    %v200 = vld [vmem:[#allocation7 + $0x68] sm:$0xff]
    %v201 = vld [vmem:[#allocation7 + $0x70] sm:$0xff]
    %v202 = vld [vmem:[#allocation7 + $0x78] sm:$0xff]
    %v203 = vlaneseq
    %v204 = vshrl.u32 %v203, 7
    %v205 = vsub.s32 0, %v204
    %v206 = vrot.slane %v92, %v205
    %207 = vmatprep.subr.mxu0 0.0
    %208 = vmatpush1.msra.mxu0 %v202
    %209 = vmatprep.subr.mxu0 0.0
    %210 = vmatpush1.msra.mxu0 %v201
    %211 = vmatprep.subr.mxu0 0.0
    %212 = vmatpush1.msra.mxu0 %v200
    %213 = vmatprep.subr.mxu0 0.0
    %214 = vmatpush1.msra.mxu0 %v199
    %215 = vmatprep.subr.mxu0 0.0
    %216 = vmatpush1.msra.mxu0 %v198
    %217 = vmatprep.subr.mxu0 0.0
    %218 = vmatpush1.msra.mxu0 %v197
    %219 = vmatprep.subr.mxu0 0.0
    %220 = vmatpush1.msra.mxu0 %v196
    %221 = vmatprep.subr.mxu0 0.0
    %222 = vmatpush1.msra.mxu0 %v195
    %223 = vmatprep.subr.mxu0 0.0
    %224 = vmatpush1.msra.mxu0 %v194
    %225 = vmatprep.subr.mxu0 0.0
    %226 = vmatpush1.msra.mxu0 %v193
    %227 = vmatprep.subr.mxu0 0.0
    %228 = vmatpush1.msra.mxu0 %v192
    %229 = vmatprep.subr.mxu0 0.0
    %230 = vmatpush1.msra.mxu0 %v191
    %231 = vmatprep.subr.mxu0 0.0
    %232 = vmatpush1.msra.mxu0 %v190
    %233 = vmatprep.subr.mxu0 0.0
    %234 = vmatpush1.msra.mxu0 %v189
    %235 = vmatprep.subr.mxu0 0.0
    %236 = vmatpush1.msra.mxu0 %v188
    %237 = vmatprep.subr.mxu0 0.0
    %238 = vmatpush1.msra.mxu0 %v187
    %239 = vmatprep.subr.mxu0 0.0
    %240 = vmatpush2.msra.mxu0 0.0
    %241 = vmatprep.subr.mxu0 0.0
    %242 = vmatpush2.msra.mxu0 0.0
    %243 = vmatprep.subr.mxu0 0.0
    %244 = vmatpush2.msra.mxu0 0.0
    %245 = vmatprep.subr.mxu0 0.0
    %246 = vmatpush2.msra.mxu0 0.0
    %247 = vmatprep.subr.mxu0 0.0
    %248 = vmatpush2.msra.mxu0 0.0
    %249 = vmatprep.subr.mxu0 0.0
    %250 = vmatpush2.msra.mxu0 0.0
    %251 = vmatprep.subr.mxu0 0.0
    %252 = vmatpush2.msra.mxu0 0.0
    %253 = vmatprep.subr.mxu0 0.0
    %254 = vmatpush2.msra.mxu0 0.0
    %255 = vmatprep.subr.mxu0 0.0
    %256 = vmatpush2.msra.mxu0 0.0
    %257 = vmatprep.subr.mxu0 0.0
    %258 = vmatpush2.msra.mxu0 0.0
    %259 = vmatprep.subr.mxu0 0.0
    %260 = vmatpush2.msra.mxu0 0.0
    %261 = vmatprep.subr.mxu0 0.0
    %262 = vmatpush2.msra.mxu0 0.0
    %263 = vmatprep.subr.mxu0 0.0
    %264 = vmatpush2.msra.mxu0 0.0
    %265 = vmatprep.subr.mxu0 0.0
    %266 = vmatpush2.msra.mxu0 0.0
    %267 = vmatprep.subr.mxu0 0.0
    %268 = vmatpush2.msra.mxu0 0.0
    %269 = vmatprep.subr.mxu0 0.0
    %270 = vmatpush2.msra.mxu0 0.0
    %271 = vmatprep.mubr.f32.mxu0 0.0
    %272 = vmatmul.mubr.f32.gmra.mxu0 %v186
    %v273 = vpop.f32.mrf.mxu0
    %v274 = vadd.f32 %v206, %v273
    %v275 = vpop.f32.mrf.mxu0
    %276 = vdwg.mxu0
    %v277 = vmax.f32 %v274, 0.0
    %v278 = vld [vmem:[#allocation8] sm:$0xff]
    %v279 = vld [vmem:[#allocation8 + $0x8] sm:$0xff]
    %v280 = vld [vmem:[#allocation8 + $0x10] sm:$0xff]
    %v281 = vld [vmem:[#allocation8 + $0x18] sm:$0xff]
    %v282 = vld [vmem:[#allocation8 + $0x20] sm:$0xff]
    %v283 = vld [vmem:[#allocation8 + $0x28] sm:$0xff]
    %v284 = vld [vmem:[#allocation8 + $0x30] sm:$0xff]
    %v285 = vld [vmem:[#allocation8 + $0x38] sm:$0xff]
    %v286 = vld [vmem:[#allocation8 + $0x40] sm:$0xff]
    %v287 = vld [vmem:[#allocation8 + $0x48] sm:$0xff]
    %v288 = vld [vmem:[#allocation8 + $0x50] sm:$0xff]
    %v289 = vld [vmem:[#allocation8 + $0x58] sm:$0xff]
    %v290 = vld [vmem:[#allocation8 + $0x60] sm:$0xff]
    %v291 = vld [vmem:[#allocation8 + $0x68] sm:$0xff]
    %v292 = vld [vmem:[#allocation8 + $0x70] sm:$0xff]
    %v293 = vld [vmem:[#allocation8 + $0x78] sm:$0xff]
    %v294 = vlaneseq
    %v295 = vshrl.u32 %v294, 7
    %v296 = vsub.s32 0, %v295
    %v297 = vrot.slane %v93, %v296
    %298 = vmatprep.subr.mxu0 0.0
    %299 = vmatpush1.msra.mxu0 %v293
    %300 = vmatprep.subr.mxu0 0.0
    %301 = vmatpush1.msra.mxu0 %v292
    %302 = vmatprep.subr.mxu0 0.0
    %303 = vmatpush1.msra.mxu0 %v291
    %304 = vmatprep.subr.mxu0 0.0
    %305 = vmatpush1.msra.mxu0 %v290
    %306 = vmatprep.subr.mxu0 0.0
    %307 = vmatpush1.msra.mxu0 %v289
    %308 = vmatprep.subr.mxu0 0.0
    %309 = vmatpush1.msra.mxu0 %v288
    %310 = vmatprep.subr.mxu0 0.0
    %311 = vmatpush1.msra.mxu0 %v287
    %312 = vmatprep.subr.mxu0 0.0
    %313 = vmatpush1.msra.mxu0 %v286
    %314 = vmatprep.subr.mxu0 0.0
    %315 = vmatpush1.msra.mxu0 %v285
    %316 = vmatprep.subr.mxu0 0.0
    %317 = vmatpush1.msra.mxu0 %v284
    %318 = vmatprep.subr.mxu0 0.0
    %319 = vmatpush1.msra.mxu0 %v283
    %320 = vmatprep.subr.mxu0 0.0
    %321 = vmatpush1.msra.mxu0 %v282
    %322 = vmatprep.subr.mxu0 0.0
    %323 = vmatpush1.msra.mxu0 %v281
    %324 = vmatprep.subr.mxu0 0.0
    %325 = vmatpush1.msra.mxu0 %v280
    %326 = vmatprep.subr.mxu0 0.0
    %327 = vmatpush1.msra.mxu0 %v279
    %328 = vmatprep.subr.mxu0 0.0
    %329 = vmatpush1.msra.mxu0 %v278
    %330 = vmatprep.subr.mxu0 0.0
    %331 = vmatpush2.msra.mxu0 0.0
    %332 = vmatprep.subr.mxu0 0.0
    %333 = vmatpush2.msra.mxu0 0.0
    %334 = vmatprep.subr.mxu0 0.0
    %335 = vmatpush2.msra.mxu0 0.0
    %336 = vmatprep.subr.mxu0 0.0
    %337 = vmatpush2.msra.mxu0 0.0
    %338 = vmatprep.subr.mxu0 0.0
    %339 = vmatpush2.msra.mxu0 0.0
    %340 = vmatprep.subr.mxu0 0.0
    %341 = vmatpush2.msra.mxu0 0.0
    %342 = vmatprep.subr.mxu0 0.0
    %343 = vmatpush2.msra.mxu0 0.0
    %344 = vmatprep.subr.mxu0 0.0
    %345 = vmatpush2.msra.mxu0 0.0
    %346 = vmatprep.subr.mxu0 0.0
    %347 = vmatpush2.msra.mxu0 0.0
    %348 = vmatprep.subr.mxu0 0.0
    %349 = vmatpush2.msra.mxu0 0.0
    %350 = vmatprep.subr.mxu0 0.0
    %351 = vmatpush2.msra.mxu0 0.0
    %352 = vmatprep.subr.mxu0 0.0
    %353 = vmatpush2.msra.mxu0 0.0
    %354 = vmatprep.subr.mxu0 0.0
    %355 = vmatpush2.msra.mxu0 0.0
    %356 = vmatprep.subr.mxu0 0.0
    %357 = vmatpush2.msra.mxu0 0.0
    %358 = vmatprep.subr.mxu0 0.0
    %359 = vmatpush2.msra.mxu0 0.0
    %360 = vmatprep.subr.mxu0 0.0
    %361 = vmatpush2.msra.mxu0 0.0
    %362 = vmatprep.mubr.f32.mxu0 0.0
    %363 = vmatmul.mubr.f32.gmra.mxu0 %v277
    %v364 = vpop.f32.mrf.mxu0
    %v365 = vadd.f32 %v297, %v364
    %v366 = vpop.f32.mrf.mxu0
    %367 = vdwg.mxu0
    %v368 = vmax.f32 %v365, 0.0
    %v369 = vld [vmem:[#allocation10] sm:$0xff]
    %v370 = vld [vmem:[#allocation10 + $0x8] sm:$0xff]
    %v371 = vld [vmem:[#allocation10 + $0x10] sm:$0xff]
    %v372 = vld [vmem:[#allocation10 + $0x18] sm:$0xff]
    %v373 = vld [vmem:[#allocation10 + $0x20] sm:$0xff]
    %v374 = vld [vmem:[#allocation10 + $0x28] sm:$0xff]
    %v375 = vld [vmem:[#allocation10 + $0x30] sm:$0xff]
    %v376 = vld [vmem:[#allocation10 + $0x38] sm:$0xff]
    %v377 = vld [vmem:[#allocation10 + $0x40] sm:$0xff]
    %v378 = vld [vmem:[#allocation10 + $0x48] sm:$0xff]
    %v379 = vld [vmem:[#allocation10 + $0x50] sm:$0xff]
    %v380 = vld [vmem:[#allocation10 + $0x58] sm:$0xff]
    %v381 = vld [vmem:[#allocation10 + $0x60] sm:$0xff]
    %v382 = vld [vmem:[#allocation10 + $0x68] sm:$0xff]
    %v383 = vld [vmem:[#allocation10 + $0x70] sm:$0xff]
    %v384 = vld [vmem:[#allocation10 + $0x78] sm:$0xff]
    %v385 = vlaneseq
    %v386 = vshrl.u32 %v385, 7
    %v387 = vsub.s32 0, %v386
    %v388 = vrot.slane %v94, %v387
    %389 = vmatprep.subr.mxu0 0.0
    %390 = vmatpush1.msra.mxu0 %v384
    %391 = vmatprep.subr.mxu0 0.0
    %392 = vmatpush1.msra.mxu0 %v383
    %393 = vmatprep.subr.mxu0 0.0
    %394 = vmatpush1.msra.mxu0 %v382
    %395 = vmatprep.subr.mxu0 0.0
    %396 = vmatpush1.msra.mxu0 %v381
    %397 = vmatprep.subr.mxu0 0.0
    %398 = vmatpush1.msra.mxu0 %v380
    %399 = vmatprep.subr.mxu0 0.0
    %400 = vmatpush1.msra.mxu0 %v379
    %401 = vmatprep.subr.mxu0 0.0
    %402 = vmatpush1.msra.mxu0 %v378
    %403 = vmatprep.subr.mxu0 0.0
    %404 = vmatpush1.msra.mxu0 %v377
    %405 = vmatprep.subr.mxu0 0.0
    %406 = vmatpush1.msra.mxu0 %v376
    %407 = vmatprep.subr.mxu0 0.0
    %408 = vmatpush1.msra.mxu0 %v375
    %409 = vmatprep.subr.mxu0 0.0
    %410 = vmatpush1.msra.mxu0 %v374
    %411 = vmatprep.subr.mxu0 0.0
    %412 = vmatpush1.msra.mxu0 %v373
    %413 = vmatprep.subr.mxu0 0.0
    %414 = vmatpush1.msra.mxu0 %v372
    %415 = vmatprep.subr.mxu0 0.0
    %416 = vmatpush1.msra.mxu0 %v371
    %417 = vmatprep.subr.mxu0 0.0
    %418 = vmatpush1.msra.mxu0 %v370
    %419 = vmatprep.subr.mxu0 0.0
    %420 = vmatpush1.msra.mxu0 %v369
    %421 = vmatprep.subr.mxu0 0.0
    %422 = vmatpush2.msra.mxu0 0.0
    %423 = vmatprep.subr.mxu0 0.0
    %424 = vmatpush2.msra.mxu0 0.0
    %425 = vmatprep.subr.mxu0 0.0
    %426 = vmatpush2.msra.mxu0 0.0
    %427 = vmatprep.subr.mxu0 0.0
    %428 = vmatpush2.msra.mxu0 0.0
    %429 = vmatprep.subr.mxu0 0.0
    %430 = vmatpush2.msra.mxu0 0.0
    %431 = vmatprep.subr.mxu0 0.0
    %432 = vmatpush2.msra.mxu0 0.0
    %433 = vmatprep.subr.mxu0 0.0
    %434 = vmatpush2.msra.mxu0 0.0
    %435 = vmatprep.subr.mxu0 0.0
    %436 = vmatpush2.msra.mxu0 0.0
    %437 = vmatprep.subr.mxu0 0.0
    %438 = vmatpush2.msra.mxu0 0.0
    %439 = vmatprep.subr.mxu0 0.0
    %440 = vmatpush2.msra.mxu0 0.0
    %441 = vmatprep.subr.mxu0 0.0
    %442 = vmatpush2.msra.mxu0 0.0
    %443 = vmatprep.subr.mxu0 0.0
    %444 = vmatpush2.msra.mxu0 0.0
    %445 = vmatprep.subr.mxu0 0.0
    %446 = vmatpush2.msra.mxu0 0.0
    %447 = vmatprep.subr.mxu0 0.0
    %448 = vmatpush2.msra.mxu0 0.0
    %449 = vmatprep.subr.mxu0 0.0
    %450 = vmatpush2.msra.mxu0 0.0
    %451 = vmatprep.subr.mxu0 0.0
    %452 = vmatpush2.msra.mxu0 0.0
    %453 = vmatprep.mubr.f32.mxu0 0.0
    %454 = vmatmul.mubr.f32.gmra.mxu0 %v368
    %v455 = vpop.f32.mrf.mxu0
    %v456 = vadd.f32 %v388, %v455
    %v457 = vpop.f32.mrf.mxu0
    %458 = vdwg.mxu0
    %v459 = vlaneseq
    %v460 = vshrl.u32 %v459, 7
    %v461 = vsub.s32 0, %v460
    %v462 = vrot.slane %v95, %v461
    %v463 = vmul.f32 %v365, %v462
    %464 = vadd.xlane.f32.xlu0 %v463
    %v465 = vpop.xlane.xlu0 %464
    %v466 = vlaneseq
    %v467 = vand.u32 %v466, 127
    %vm468 = vcmp.eq.s32.totalorder %v467, 8
    %v469 = vsel %vm468, %v465, 0.0
    %v470 = vadd.f32 %v456, %v469
    %471 = vst [vmem:[#allocation11] sm:$0xff] %v470
    // Predicated region
    $region46: #{tpu_custom_call.1} parent=1 // pred_check
      _
    $region47: #{tpu_custom_call.1} parent=1 // pred_check_branch
      %473 = sbr.rel (0) target = $region49
    $region48: #{tpu_custom_call.1} parent=1 // pred_region
      %s475 = ssub.s32 128, 128
      %476 = vsyncadd [#allocation4], %s475
      %s478 = sshll.u32 [#allocation11], 4
      %s479 = int_to_ptr.vmem [resolvable:$true] %s478
      %481 = dma.vmem_to_hbm [thread:$0]  %s479, 128, %s6, [#allocation4]
    $region49: #{tpu_custom_call.1} parent=1 // pred_fallthru
      _
    // Predicated region
    $region50: #{tpu_custom_call.1} parent=1 // pred_check
      _
    $region51: #{tpu_custom_call.1} parent=1 // pred_check_branch
      %483 = sbr.rel (0) target = $region53
    $region52: #{tpu_custom_call.1} parent=1 // pred_region
      %484 = dma.done [#allocation4], 128
    $region53: #{tpu_custom_call.1} parent=1 // pred_fallthru
      _
    %485 = vsyncpa [#allocation3], 1
    %486 = vsyncpa [#allocation6], 1
    %487 = vsyncpa [#allocation9], 1
    %488 = vsyncpa [#allocation4], 1

</llo_original>
